<compile_context>
chip_gen: v7x
topology: tpu7x:2x2x1
jax: 0.10.0
libtpu: 0.0.40
codegen_flags: <defaults>
</compile_context>

<pallas_src>
import functools

import jax
import jax.numpy as jnp
from jax.experimental import pallas as pl
from jax.experimental.pallas import tpu as pltpu

_LANES = 128
_SUBLANES = 8


def _round_up(n, m):
    return ((n + m - 1) // m) * m


def _label_smoothing_kernel(x_ref, t_ref, o_ref, *, confidence, smooth,
                            tile_rows, chunk_rows, n_chunks, full_rows, rem,
                            need_mask):
    i = pl.program_id(0)

    def chunk_partial(c, masked):
        start = pl.multiple_of(c * chunk_rows, chunk_rows)
        x = x_ref[pl.ds(start, chunk_rows), :].astype(jnp.float32)
        t = t_ref[pl.ds(start, chunk_rows), :].astype(jnp.float32)
        # target1 = conf*t + (1-t)*smooth == smooth + (conf-smooth)*t
        t1 = smooth + (confidence - smooth) * t
        # -(t1*log(sigmoid(x)) + (1-t1)*log(1-sigmoid(x))) == softplus(x) - t1*x
        softplus = jnp.maximum(x, 0.0) + jnp.log1p(jnp.exp(-jnp.abs(x)))
        loss = softplus - t1 * x
        if masked:
            # Row-based tail mask (select, never multiply): rows past the end of
            # the array hold DMA garbage (possibly NaN/Inf); the single boundary
            # row may additionally be lane-padded.
            row = (i * tile_rows + start
                   + jax.lax.broadcasted_iota(jnp.int32, loss.shape, 0))
            valid = row < full_rows
            if rem:
                lane = jax.lax.broadcasted_iota(jnp.int32, loss.shape, 1)
                valid = jnp.logical_or(
                    valid, jnp.logical_and(row == full_rows, lane < rem))
            loss = jnp.where(valid, loss, 0.0)
        # Fold to a vreg-shaped (8,128) partial with pure VPU adds (no XLU).
        return loss.reshape(chunk_rows // _SUBLANES, _SUBLANES, _LANES).sum(axis=0)

    def run(masked):
        def body(c, acc):
            return acc + chunk_partial(c, masked)

        acc = jax.lax.fori_loop(0, n_chunks, body,
                                jnp.zeros((_SUBLANES, _LANES), jnp.float32),
                                unroll=min(4, n_chunks))
        o_ref[...] = acc

    if need_mask:
        last = pl.num_programs(0) - 1

        @pl.when(i == last)
        def _():
            run(masked=True)

        @pl.when(i != last)
        def _():
            run(masked=False)
    else:
        run(masked=False)


def label_smoothing_loss(x, target, *, smoothing=0.0, n_cls=2,
                         max_tile_rows=4096, chunk_rows=512):
    """Scalar mean label-smoothed NLL loss (matches PyTorch LabelSmoothing.forward).

    max_tile_rows=4096 (2 MiB f32 per input tile, double-buffered) is safe for
    default scoped VMEM on v5e/v6e/v7x; on v7x it can be raised to 8192 to
    amortize per-grid-step overhead.
    """
    assert x.shape == target.shape

    confidence = 1.0 - smoothing + smoothing / n_cls
    smooth = smoothing / n_cls

    n = x.size
    full_rows, rem = divmod(n, _LANES)
    rows = full_rows + (1 if rem else 0)

    # Lane-dense (rows, 128) slab; pad ONLY the lane remainder (< 128 elems).
    x_flat = x.reshape(-1)
    t_flat = target.reshape(-1)
    if rem:
        pad = _LANES - rem
        x_flat = jnp.pad(x_flat, (0, pad))
        t_flat = jnp.pad(t_flat, (0, pad))
    x2 = x_flat.reshape(rows, _LANES)
    t2 = t_flat.reshape(rows, _LANES)

    # Tile sizing: tile_rows = n_chunks * chunk (multiples of 8 sublanes).
    if rows <= chunk_rows:
        chunk = _round_up(max(rows, _SUBLANES), _SUBLANES)
        n_chunks = 1
    else:
        chunk = chunk_rows
        n_chunks = max(1, min(max_tile_rows // chunk, -(-rows // chunk)))
    tile_rows = chunk * n_chunks
    grid = -(-rows // tile_rows)

    # Mask is needed only if the last block is ragged or there was lane padding.
    need_mask = (rem != 0) or (rows % tile_rows != 0)

    kernel = functools.partial(
        _label_smoothing_kernel,
        confidence=confidence,
        smooth=smooth,
        tile_rows=tile_rows,
        chunk_rows=chunk,
        n_chunks=n_chunks,
        full_rows=full_rows,
        rem=rem,
        need_mask=need_mask,
    )

    out_rows = grid * _SUBLANES
    cost = pl.CostEstimate(
        flops=6 * n,
        transcendentals=2 * n,
        bytes_accessed=(x2.size * x2.dtype.itemsize
                        + t2.size * t2.dtype.itemsize
                        + out_rows * _LANES * 4),
    )

    partials = pl.pallas_call(
        kernel,
        out_shape=jax.ShapeDtypeStruct((out_rows, _LANES), jnp.float32),
        grid_spec=pltpu.PrefetchScalarGridSpec(
            num_scalar_prefetch=0,
            grid=(grid,),
            in_specs=[
                pl.BlockSpec((tile_rows, _LANES), lambda i: (i, 0)),
                pl.BlockSpec((tile_rows, _LANES), lambda i: (i, 0)),
            ],
            out_specs=pl.BlockSpec((_SUBLANES, _LANES), lambda i: (i, 0)),
        ),
        compiler_params=pltpu.CompilerParams(
            dimension_semantics=("parallel",)),
        cost_estimate=cost,
    )(x2, t2)

    # Tiny final reduction over grid*8*128 partials + mean, done in the wrapper.
    return jnp.sum(partials) / n


def _reference(x, target, smoothing, n_cls):
    # Literal translation of the PyTorch forward (sigmoid + eps'd logs).
    confidence = 1.0 - smoothing + smoothing / n_cls
    smooth = smoothing / n_cls
    probs = jax.nn.sigmoid(x.astype(jnp.float32))
    t1 = confidence * target + (1.0 - target) * smooth
    loss = -(jnp.log(probs + 1e-15) * t1
             + (1.0 - t1) * jnp.log(1.0 - probs + 1e-15))
    return loss.mean()


if __name__ == "__main__":
    key = jax.random.PRNGKey(0)
    kx, kt = jax.random.split(key)

    # 16 samples x 206 scored target columns (deliberately not a multiple of
    # 128, exercising the lane-remainder pad + ragged-tail mask path).
    B, C = 16, 206
    smoothing = 0.1
    n_cls = 2

    x = jax.random.normal(kx, (B, C), dtype=jnp.float32)
    target = jax.random.bernoulli(kt, 0.3, (B, C)).astype(jnp.float32)

    out = label_smoothing_loss(x, target, smoothing=smoothing, n_cls=n_cls)
    out = jax.block_until_ready(out)

    ref = _reference(x, target, smoothing, n_cls)
    assert jnp.allclose(out, ref, rtol=1e-5, atol=1e-5), (out, ref)

    print("KERNEL_OK")
</pallas_src>

<mosaic_0001>
module attributes {stable_mosaic.version = 11 : i64} {
  func.func @_label_smoothing_kernel(%arg0: i32, %arg1: memref<32x128xf32, #tpu.memory_space<vmem>>, %arg2: memref<32x128xf32, #tpu.memory_space<vmem>>, %arg3: memref<8x128xf32, #tpu.memory_space<vmem>>) attributes {dimension_semantics = [#tpu.dimension_semantics<parallel>], iteration_bounds = array<i64: 1>, scalar_prefetch = 0 : i64, scratch_operands = 0 : i64, tpu.core_type = #tpu.core_type<tc>, window_params = [{transform_indices = @transform_0, window_bounds = array<i64: 32, 128>}, {transform_indices = @transform_1, window_bounds = array<i64: 32, 128>}, {transform_indices = @transform_2, window_bounds = array<i64: 8, 128>}]} {
    %c0_i32 = arith.constant 0 : i32
    %0 = arith.cmpi eq, %arg0, %c0_i32 : i32
    %1 = arith.extui %0 : i1 to i32
    %c0_i32_0 = arith.constant 0 : i32
    %2 = arith.cmpi ne, %1, %c0_i32_0 : i32
    scf.if %2 {
      %cst = arith.constant 0.000000e+00 : f32
      %6 = vector.broadcast %cst : f32 to vector<8x128xf32>
      %c0_i32_3 = arith.constant 0 : i32
      %c32_i32 = arith.constant 32 : i32
      %7 = arith.muli %c0_i32_3, %c32_i32 : i32
      %8 = tpu.assume_multiple %7, 32 : i32
      %9 = arith.index_cast %8 : i32 to index
      %c0 = arith.constant 0 : index
      %10 = vector.load %arg1[%9, %c0] : memref<32x128xf32, #tpu.memory_space<vmem>>, vector<32x128xf32>
      %11 = arith.index_cast %8 : i32 to index
      %c0_4 = arith.constant 0 : index
      %12 = vector.load %arg2[%11, %c0_4] : memref<32x128xf32, #tpu.memory_space<vmem>>, vector<32x128xf32>
      %cst_5 = arith.constant 0.899999976 : f32
      %13 = vector.broadcast %cst_5 : f32 to vector<32x128xf32>
      %14 = arith.mulf %13, %12 : vector<32x128xf32>
      %cst_6 = arith.constant 5.000000e-02 : f32
      %15 = vector.broadcast %cst_6 : f32 to vector<32x128xf32>
      %16 = arith.addf %15, %14 : vector<32x128xf32>
      %cst_7 = arith.constant 0.000000e+00 : f32
      %17 = vector.broadcast %cst_7 : f32 to vector<32x128xf32>
      %18 = arith.maximumf %10, %17 : vector<32x128xf32>
      %19 = math.absf %10 : vector<32x128xf32>
      %cst_8 = arith.constant 0.000000e+00 : f32
      %20 = vector.broadcast %cst_8 : f32 to vector<32x128xf32>
      %21 = arith.subf %20, %19 : vector<32x128xf32>
      %22 = math.exp %21 : vector<32x128xf32>
      %23 = math.log1p %22 : vector<32x128xf32>
      %24 = arith.addf %18, %23 : vector<32x128xf32>
      %25 = arith.mulf %16, %10 : vector<32x128xf32>
      %26 = arith.subf %24, %25 : vector<32x128xf32>
      %c32_i32_9 = arith.constant 32 : i32
      %27 = arith.muli %arg0, %c32_i32_9 : i32
      %28 = arith.addi %27, %8 : i32
      %29 = tpu.iota {dimensions = array<i32: 0>} : vector<32x128xi32>
      %30 = vector.broadcast %28 : i32 to vector<32x128xi32>
      %31 = arith.addi %30, %29 : vector<32x128xi32>
      %c25_i32 = arith.constant 25 : i32
      %32 = vector.broadcast %c25_i32 : i32 to vector<32x128xi32>
      %33 = arith.cmpi slt, %31, %32 : vector<32x128xi32>
      %34 = tpu.iota {dimensions = array<i32: 1>} : vector<32x128xi32>
      %c25_i32_10 = arith.constant 25 : i32
      %35 = vector.broadcast %c25_i32_10 : i32 to vector<32x128xi32>
      %36 = arith.cmpi eq, %31, %35 : vector<32x128xi32>
      %c96_i32 = arith.constant 96 : i32
      %37 = vector.broadcast %c96_i32 : i32 to vector<32x128xi32>
      %38 = arith.cmpi slt, %34, %37 : vector<32x128xi32>
      %39 = arith.andi %36, %38 : vector<32x128xi1>
      %40 = arith.ori %33, %39 : vector<32x128xi1>
      %cst_11 = arith.constant 0.000000e+00 : f32
      %41 = vector.broadcast %cst_11 : f32 to vector<32x128xf32>
      %42 = arith.select %40, %26, %41 : vector<32x128xi1>, vector<32x128xf32>
      %43 = vector.shape_cast %42 : vector<32x128xf32> to vector<4x8x128xf32>
      %cst_12 = arith.constant dense<0.000000e+00> : vector<8x128xf32>
      %44 = vector.multi_reduction <add>, %43, %cst_12 [0] : vector<4x8x128xf32> to vector<8x128xf32>
      %45 = arith.addf %6, %44 : vector<8x128xf32>
      %c1_i32 = arith.constant 1 : i32
      %c0_13 = arith.constant 0 : index
      %c0_14 = arith.constant 0 : index
      %46 = vector.load %arg3[%c0_13, %c0_14] : memref<8x128xf32, #tpu.memory_space<vmem>>, vector<8x128xf32>
      tpu.vector_store %arg3[%c0_13, %c0_14], %45 {strides = array<i32>} : memref<8x128xf32, #tpu.memory_space<vmem>>, vector<8x128xf32>,
    } else {
    }
    %c0_i32_1 = arith.constant 0 : i32
    %3 = arith.cmpi ne, %arg0, %c0_i32_1 : i32
    %4 = arith.extui %3 : i1 to i32
    %c0_i32_2 = arith.constant 0 : i32
    %5 = arith.cmpi ne, %4, %c0_i32_2 : i32
    scf.if %5 {
      %cst = arith.constant 0.000000e+00 : f32
      %6 = vector.broadcast %cst : f32 to vector<8x128xf32>
      %c0_i32_3 = arith.constant 0 : i32
      %c32_i32 = arith.constant 32 : i32
      %7 = arith.muli %c0_i32_3, %c32_i32 : i32
      %8 = tpu.assume_multiple %7, 32 : i32
      %9 = arith.index_cast %8 : i32 to index
      %c0 = arith.constant 0 : index
      %10 = vector.load %arg1[%9, %c0] : memref<32x128xf32, #tpu.memory_space<vmem>>, vector<32x128xf32>
      %11 = arith.index_cast %8 : i32 to index
      %c0_4 = arith.constant 0 : index
      %12 = vector.load %arg2[%11, %c0_4] : memref<32x128xf32, #tpu.memory_space<vmem>>, vector<32x128xf32>
      %cst_5 = arith.constant 0.899999976 : f32
      %13 = vector.broadcast %cst_5 : f32 to vector<32x128xf32>
      %14 = arith.mulf %13, %12 : vector<32x128xf32>
      %cst_6 = arith.constant 5.000000e-02 : f32
      %15 = vector.broadcast %cst_6 : f32 to vector<32x128xf32>
      %16 = arith.addf %15, %14 : vector<32x128xf32>
      %cst_7 = arith.constant 0.000000e+00 : f32
      %17 = vector.broadcast %cst_7 : f32 to vector<32x128xf32>
      %18 = arith.maximumf %10, %17 : vector<32x128xf32>
      %19 = math.absf %10 : vector<32x128xf32>
      %cst_8 = arith.constant 0.000000e+00 : f32
      %20 = vector.broadcast %cst_8 : f32 to vector<32x128xf32>
      %21 = arith.subf %20, %19 : vector<32x128xf32>
      %22 = math.exp %21 : vector<32x128xf32>
      %23 = math.log1p %22 : vector<32x128xf32>
      %24 = arith.addf %18, %23 : vector<32x128xf32>
      %25 = arith.mulf %16, %10 : vector<32x128xf32>
      %26 = arith.subf %24, %25 : vector<32x128xf32>
      %27 = vector.shape_cast %26 : vector<32x128xf32> to vector<4x8x128xf32>
      %cst_9 = arith.constant dense<0.000000e+00> : vector<8x128xf32>
      %28 = vector.multi_reduction <add>, %27, %cst_9 [0] : vector<4x8x128xf32> to vector<8x128xf32>
      %29 = arith.addf %6, %28 : vector<8x128xf32>
      %c1_i32 = arith.constant 1 : i32
      %c0_10 = arith.constant 0 : index
      %c0_11 = arith.constant 0 : index
      %30 = vector.load %arg3[%c0_10, %c0_11] : memref<8x128xf32, #tpu.memory_space<vmem>>, vector<8x128xf32>
      tpu.vector_store %arg3[%c0_10, %c0_11], %29 {strides = array<i32>} : memref<8x128xf32, #tpu.memory_space<vmem>>, vector<8x128xf32>,
    } else {
    }
    return
  }
  func.func @transform_0(%arg0: i32) -> (i32, i32) {
    %c0_i32 = arith.constant 0 : i32
    %c0_i32_0 = arith.constant 0 : i32
    return %arg0, %c0_i32 : i32, i32
  }
  func.func @transform_1(%arg0: i32) -> (i32, i32) {
    %c0_i32 = arith.constant 0 : i32
    %c0_i32_0 = arith.constant 0 : i32
    return %arg0, %c0_i32 : i32, i32
  }
  func.func @transform_2(%arg0: i32) -> (i32, i32) {
    %c0_i32 = arith.constant 0 : i32
    %c0_i32_0 = arith.constant 0 : i32
    return %arg0, %c0_i32 : i32, i32
  }
}

</mosaic_0001>

<llo_original>
// kernel: tpu_custom_call.1
$region0: #{tpu_custom_call.1}
  #allocation0 [shape = 'u32[]', space=smem, size = 0x4, offset = 0x4, fixed_abs, tag = 'smem constant byte address 0x4 - core index']
  #allocation1 [shape = 'u32[144,128]{1,0:T(1,128)}', space=vmem, size = 0x12000, scoped, tag = 'internal scratch']
  %s0 = inlined_call_operand.hbm [shape: f32[26,128], index: 0, kind: input, shape index: {}]
  %s1 = inlined_call_operand.hbm [shape: f32[26,128], index: 1, kind: input, shape index: {}]
  %s2 = inlined_call_operand.hbm [shape: f32[8,128], index: 2, kind: output, shape index: {}]
  %s3 = sld [smem:[#allocation0]]
  $region34: #{tpu_custom_call.1} parent=0
    _
  %s5 = ssub.s32 1, %s3
  %s6 = scalar_select 0, %s5, %s3
  $region1: #{tpu_custom_call.1} parent=0
    #allocation2 [shape = 'u8[16384]{0}', space=vmem, size = 0x4000, scoped, tag = 'input window, operand 0, single buffered']
    #allocation3 [shape = 's32[1]{0}', space=sflag, size = 0x4, scoped, tag = 'scoped memory for tpu_custom_call.1']
    #allocation4 [shape = 's32[1]{0}', space=sflag, size = 0x4, scoped, tag = 'scoped memory for tpu_custom_call.1']
    #allocation5 [shape = 'u8[16384]{0}', space=vmem, size = 0x4000, scoped, tag = 'input window, operand 1, single buffered']
    #allocation6 [shape = 's32[1]{0}', space=sflag, size = 0x4, scoped, tag = 'scoped memory for tpu_custom_call.1']
    #allocation7 [shape = 'u8[4096]{0}', space=vmem, size = 0x1000, scoped, tag = 'output window, operand 0, single buffered']
    %7 = vsyncpa [#allocation3], 0
    %8 = vsyncpa [#allocation6], 0
    %9 = vsyncpa [#allocation4], 0
    // Predicated region
    $region2: #{tpu_custom_call.1} parent=1 // pred_check
      _
    $region3: #{tpu_custom_call.1} parent=1 // pred_check_branch
      %11 = sbr.rel (0) target = $region5
    $region4: #{tpu_custom_call.1} parent=1 // pred_region
      %s13 = ssub.s32 512, 512
      %14 = vsyncadd [#allocation3], %s13
      %s15 = sshll.u32 [#allocation2], 4
      %s16 = int_to_ptr.vmem [resolvable:$true] %s15
      %21 = dma.hbm_to_vmem [thread:$0]  %s0, 512, %s16, [#allocation3], 128, 128, 8
    $region5: #{tpu_custom_call.1} parent=1 // pred_fallthru
      _
    // Predicated region
    $region6: #{tpu_custom_call.1} parent=1 // pred_check
      _
    $region7: #{tpu_custom_call.1} parent=1 // pred_check_branch
      %23 = sbr.rel (0) target = $region9
    $region8: #{tpu_custom_call.1} parent=1 // pred_region
      %s25 = ssub.s32 512, 512
      %26 = vsyncadd [#allocation6], %s25
      %s27 = sshll.u32 [#allocation5], 4
      %s28 = int_to_ptr.vmem [resolvable:$true] %s27
      %33 = dma.hbm_to_vmem [thread:$0]  %s1, 512, %s28, [#allocation6], 128, 128, 8
    $region9: #{tpu_custom_call.1} parent=1 // pred_fallthru
      _
    // Predicated region
    $region10: #{tpu_custom_call.1} parent=1 // pred_check
      _
    $region11: #{tpu_custom_call.1} parent=1 // pred_check_branch
      %35 = sbr.rel (0) target = $region13
    $region12: #{tpu_custom_call.1} parent=1 // pred_region
      %36 = dma.done [#allocation3], 512
    $region13: #{tpu_custom_call.1} parent=1 // pred_fallthru
      _
    // Predicated region
    $region14: #{tpu_custom_call.1} parent=1 // pred_check
      _
    $region15: #{tpu_custom_call.1} parent=1 // pred_check_branch
      %38 = sbr.rel (0) target = $region17
    $region16: #{tpu_custom_call.1} parent=1 // pred_region
      %39 = dma.done [#allocation6], 512
    $region17: #{tpu_custom_call.1} parent=1 // pred_fallthru
      _
    %p40 = scmp.eq.s32.totalorder 0, 0
    // Predicated region
    $region18: #{tpu_custom_call.1} parent=1 // pred_check
      %p41 = pneg %p40
    $region19: #{tpu_custom_call.1} parent=1 // pred_check_branch
      %43 = sbr.rel (%p41) target = $region21
    $region20: #{tpu_custom_call.1} parent=1 // pred_region
      %v44 = vld [vmem:[#allocation2] sm:$0xff]
      %v45 = vld [vmem:[#allocation2 + $0x8] sm:$0xff]
      %v46 = vld [vmem:[#allocation2 + $0x10] sm:$0xff]
      %v47 = vld [vmem:[#allocation2 + $0x18] sm:$0xff]
      %v48 = vld [vmem:[#allocation5] sm:$0xff]
      %v49 = vld [vmem:[#allocation5 + $0x8] sm:$0xff]
      %v50 = vld [vmem:[#allocation5 + $0x10] sm:$0xff]
      %v51 = vld [vmem:[#allocation5 + $0x18] sm:$0xff]
      %v52 = vmul.f32 %v48, 0.9
      %v53 = vmul.f32 %v49, 0.9
      %v54 = vmul.f32 %v50, 0.9
      %v55 = vmul.f32 %v51, 0.9
      %v56 = vadd.f32 %v52, 0.05
      %v57 = vadd.f32 %v53, 0.05
      %v58 = vadd.f32 %v54, 0.05
      %v59 = vadd.f32 %v55, 0.05
      %v60 = vmax.f32 %v44, 0.0
      %v61 = vmax.f32 %v45, 0.0
      %v62 = vmax.f32 %v46, 0.0
      %v63 = vmax.f32 %v47, 0.0
      %v64 = vand.u32 2147483647, %v44
      %v65 = vand.u32 2147483647, %v45
      %v66 = vand.u32 2147483647, %v46
      %v67 = vand.u32 2147483647, %v47
      %v68 = vsub.f32 0.0, %v64
      %v69 = vsub.f32 0.0, %v65
      %v70 = vsub.f32 0.0, %v66
      %v71 = vsub.f32 0.0, %v67
      %v72 = vmul.f32 %v68, 1.442695
      %v73 = vpow.pop %v72
      %v74 = vmul.f32 %v69, 1.442695
      %v75 = vpow.pop %v74
      %v76 = vmul.f32 %v70, 1.442695
      %v77 = vpow.pop %v76
      %v78 = vmul.f32 %v71, 1.442695
      %v79 = vpow.pop %v78
      %v80 = vadd.f32 %v73, 1.0
      %v81 = vlog2.pop %v80
      %v82 = vmul.f32 %v81, 0.6931472
      %v83 = vmul.f32 -0.5, %v73
      %v84 = vadd.f32 %v83, 1.0
      %v85 = vmul.f32 %v84, %v73
      %v86 = vand.u32 2147483647, %v73
      %vm87 = vcmp.lt.f32.partialorder %v86, 0.0004427343
      %v88 = vsel %vm87, %v85, %v82
      %v89 = vadd.f32 %v75, 1.0
      %v90 = vlog2.pop %v89
      %v91 = vmul.f32 %v90, 0.6931472
      %v92 = vmul.f32 -0.5, %v75
      %v93 = vadd.f32 %v92, 1.0
      %v94 = vmul.f32 %v93, %v75
      %v95 = vand.u32 2147483647, %v75
      %vm96 = vcmp.lt.f32.partialorder %v95, 0.0004427343
      %v97 = vsel %vm96, %v94, %v91
      %v98 = vadd.f32 %v77, 1.0
      %v99 = vlog2.pop %v98
      %v100 = vmul.f32 %v99, 0.6931472
      %v101 = vmul.f32 -0.5, %v77
      %v102 = vadd.f32 %v101, 1.0
      %v103 = vmul.f32 %v102, %v77
      %v104 = vand.u32 2147483647, %v77
      %vm105 = vcmp.lt.f32.partialorder %v104, 0.0004427343
      %v106 = vsel %vm105, %v103, %v100
      %v107 = vadd.f32 %v79, 1.0
      %v108 = vlog2.pop %v107
      %v109 = vmul.f32 %v108, 0.6931472
      %v110 = vmul.f32 -0.5, %v79
      %v111 = vadd.f32 %v110, 1.0
      %v112 = vmul.f32 %v111, %v79
      %v113 = vand.u32 2147483647, %v79
      %vm114 = vcmp.lt.f32.partialorder %v113, 0.0004427343
      %v115 = vsel %vm114, %v112, %v109
      %v116 = vadd.f32 %v60, %v88
      %v117 = vadd.f32 %v61, %v97
      %v118 = vadd.f32 %v62, %v106
      %v119 = vadd.f32 %v63, %v115
      %v120 = vmul.f32 %v56, %v44
      %v121 = vmul.f32 %v57, %v45
      %v122 = vmul.f32 %v58, %v46
      %v123 = vmul.f32 %v59, %v47
      %v124 = vsub.f32 %v116, %v120
      %v125 = vsub.f32 %v117, %v121
      %v126 = vsub.f32 %v118, %v122
      %v127 = vsub.f32 %v119, %v123
      %s128 = smul.u32 0, 32
      %s129 = sadd.s32 %s128, 0
      %v130 = vlaneseq
      %v131 = vshrl.u32 %v130, 7
      %v132 = vadd.s32 %v131, 8
      %v133 = vadd.s32 %v131, 16
      %v134 = vadd.s32 %v131, 24
      %v135 = vstv %s129
      %v136 = vadd.s32 %v135, %v131
      %v137 = vadd.s32 %v135, %v132
      %v138 = vadd.s32 %v135, %v133
      %v139 = vadd.s32 %v135, %v134
      %vm140 = vcmp.lt.s32.totalorder %v136, 25
      %vm141 = vcmp.lt.s32.totalorder %v137, 25
      %vm142 = vcmp.lt.s32.totalorder %v138, 25
      %vm143 = vcmp.lt.s32.totalorder %v139, 25
      %v144 = vlaneseq
      %v145 = vand.u32 %v144, 127
      %vm146 = vcmp.eq.s32.totalorder %v136, 25
      %vm147 = vcmp.eq.s32.totalorder %v137, 25
      %vm148 = vcmp.eq.s32.totalorder %v138, 25
      %vm149 = vcmp.eq.s32.totalorder %v139, 25
      %vm150 = vcmp.lt.s32.totalorder %v145, 96
      %vm151 = vmand %vm146, %vm150
      %vm152 = vmand %vm147, %vm150
      %vm153 = vmand %vm148, %vm150
      %vm154 = vmand %vm149, %vm150
      %vm155 = vmor %vm140, %vm151
      %vm156 = vmor %vm141, %vm152
      %vm157 = vmor %vm142, %vm153
      %vm158 = vmor %vm143, %vm154
      %v159 = vsel %vm155, %v124, 0.0
      %v160 = vsel %vm156, %v125, 0.0
      %v161 = vsel %vm157, %v126, 0.0
      %v162 = vsel %vm158, %v127, 0.0
      %v163 = vadd.f32 %v159, %v160
      %v164 = vadd.f32 %v163, %v161
      %v165 = vadd.f32 %v164, %v162
      %v166 = vadd.f32 %v165, 0.0
      %167 = vst [vmem:[#allocation7] sm:$0xff] %v166
    $region21: #{tpu_custom_call.1} parent=1 // pred_fallthru
      _
    %p168 = scmp.ne.s32.totalorder 0, 0
    // Predicated region
    $region22: #{tpu_custom_call.1} parent=1 // pred_check
      %p169 = pneg %p168
    $region23: #{tpu_custom_call.1} parent=1 // pred_check_branch
      %171 = sbr.rel (%p169) target = $region25
    $region24: #{tpu_custom_call.1} parent=1 // pred_region
      %v172 = vld [vmem:[#allocation2] sm:$0xff]
      %v173 = vld [vmem:[#allocation2 + $0x8] sm:$0xff]
      %v174 = vld [vmem:[#allocation2 + $0x10] sm:$0xff]
      %v175 = vld [vmem:[#allocation2 + $0x18] sm:$0xff]
      %v176 = vld [vmem:[#allocation5] sm:$0xff]
      %v177 = vld [vmem:[#allocation5 + $0x8] sm:$0xff]
      %v178 = vld [vmem:[#allocation5 + $0x10] sm:$0xff]
      %v179 = vld [vmem:[#allocation5 + $0x18] sm:$0xff]
      %v180 = vmul.f32 %v176, 0.9
      %v181 = vmul.f32 %v177, 0.9
      %v182 = vmul.f32 %v178, 0.9
      %v183 = vmul.f32 %v179, 0.9
      %v184 = vadd.f32 %v180, 0.05
      %v185 = vadd.f32 %v181, 0.05
      %v186 = vadd.f32 %v182, 0.05
      %v187 = vadd.f32 %v183, 0.05
      %v188 = vmax.f32 %v172, 0.0
      %v189 = vmax.f32 %v173, 0.0
      %v190 = vmax.f32 %v174, 0.0
      %v191 = vmax.f32 %v175, 0.0
      %v192 = vand.u32 2147483647, %v172
      %v193 = vand.u32 2147483647, %v173
      %v194 = vand.u32 2147483647, %v174
      %v195 = vand.u32 2147483647, %v175
      %v196 = vsub.f32 0.0, %v192
      %v197 = vsub.f32 0.0, %v193
      %v198 = vsub.f32 0.0, %v194
      %v199 = vsub.f32 0.0, %v195
      %v200 = vmul.f32 %v196, 1.442695
      %v201 = vpow.pop %v200
      %v202 = vmul.f32 %v197, 1.442695
      %v203 = vpow.pop %v202
      %v204 = vmul.f32 %v198, 1.442695
      %v205 = vpow.pop %v204
      %v206 = vmul.f32 %v199, 1.442695
      %v207 = vpow.pop %v206
      %v208 = vadd.f32 %v201, 1.0
      %v209 = vlog2.pop %v208
      %v210 = vmul.f32 %v209, 0.6931472
      %v211 = vmul.f32 -0.5, %v201
      %v212 = vadd.f32 %v211, 1.0
      %v213 = vmul.f32 %v212, %v201
      %v214 = vand.u32 2147483647, %v201
      %vm215 = vcmp.lt.f32.partialorder %v214, 0.0004427343
      %v216 = vsel %vm215, %v213, %v210
      %v217 = vadd.f32 %v203, 1.0
      %v218 = vlog2.pop %v217
      %v219 = vmul.f32 %v218, 0.6931472
      %v220 = vmul.f32 -0.5, %v203
      %v221 = vadd.f32 %v220, 1.0
      %v222 = vmul.f32 %v221, %v203
      %v223 = vand.u32 2147483647, %v203
      %vm224 = vcmp.lt.f32.partialorder %v223, 0.0004427343
      %v225 = vsel %vm224, %v222, %v219
      %v226 = vadd.f32 %v205, 1.0
      %v227 = vlog2.pop %v226
      %v228 = vmul.f32 %v227, 0.6931472
      %v229 = vmul.f32 -0.5, %v205
      %v230 = vadd.f32 %v229, 1.0
      %v231 = vmul.f32 %v230, %v205
      %v232 = vand.u32 2147483647, %v205
      %vm233 = vcmp.lt.f32.partialorder %v232, 0.0004427343
      %v234 = vsel %vm233, %v231, %v228
      %v235 = vadd.f32 %v207, 1.0
      %v236 = vlog2.pop %v235
      %v237 = vmul.f32 %v236, 0.6931472
      %v238 = vmul.f32 -0.5, %v207
      %v239 = vadd.f32 %v238, 1.0
      %v240 = vmul.f32 %v239, %v207
      %v241 = vand.u32 2147483647, %v207
      %vm242 = vcmp.lt.f32.partialorder %v241, 0.0004427343
      %v243 = vsel %vm242, %v240, %v237
      %v244 = vadd.f32 %v188, %v216
      %v245 = vadd.f32 %v189, %v225
      %v246 = vadd.f32 %v190, %v234
      %v247 = vadd.f32 %v191, %v243
      %v248 = vmul.f32 %v184, %v172
      %v249 = vmul.f32 %v185, %v173
      %v250 = vmul.f32 %v186, %v174
      %v251 = vmul.f32 %v187, %v175
      %v252 = vsub.f32 %v244, %v248
      %v253 = vsub.f32 %v245, %v249
      %v254 = vsub.f32 %v246, %v250
      %v255 = vsub.f32 %v247, %v251
      %v256 = vadd.f32 %v252, %v253
      %v257 = vadd.f32 %v256, %v254
      %v258 = vadd.f32 %v257, %v255
      %v259 = vadd.f32 %v258, 0.0
      %260 = vst [vmem:[#allocation7] sm:$0xff] %v259
    $region25: #{tpu_custom_call.1} parent=1 // pred_fallthru
      _
    // Predicated region
    $region26: #{tpu_custom_call.1} parent=1 // pred_check
      _
    $region27: #{tpu_custom_call.1} parent=1 // pred_check_branch
      %262 = sbr.rel (0) target = $region29
    $region28: #{tpu_custom_call.1} parent=1 // pred_region
      %s264 = ssub.s32 128, 128
      %265 = vsyncadd [#allocation4], %s264
      %s267 = sshll.u32 [#allocation7], 4
      %s268 = int_to_ptr.vmem [resolvable:$true] %s267
      %270 = dma.vmem_to_hbm [thread:$0]  %s268, 128, %s2, [#allocation4]
    $region29: #{tpu_custom_call.1} parent=1 // pred_fallthru
      _
    // Predicated region
    $region30: #{tpu_custom_call.1} parent=1 // pred_check
      _
    $region31: #{tpu_custom_call.1} parent=1 // pred_check_branch
      %272 = sbr.rel (0) target = $region33
    $region32: #{tpu_custom_call.1} parent=1 // pred_region
      %273 = dma.done [#allocation4], 128
    $region33: #{tpu_custom_call.1} parent=1 // pred_fallthru
      _
    %274 = vsyncpa [#allocation3], 1
    %275 = vsyncpa [#allocation6], 1
    %276 = vsyncpa [#allocation4], 1

</llo_original>
